<compile_context>
chip_gen: v6e
topology: v6e:2x2x1
jax: 0.10.0
libtpu: 0.0.40
codegen_flags: <defaults>
</compile_context>

<pallas_src>
import numpy as np
import jax
import jax.numpy as jnp
from jax.experimental import pallas as pl
from jax.experimental.pallas import tpu as pltpu

LANE = 128          # TPU lane width (last-dim tile)
SUB = 8             # sublane multiple
TM_MAX = 2048       # max rows per tile: 2048 * 128 * 4 B = 1 MiB per buffer


def _round_up(x, m):
    return (x + m - 1) // m * m


def _copy_kernel(x_ref, o_ref):
    o_ref[...] = x_ref[...]


def identity_forward(x):
    """Identity.forward(x) == x, expressed as a Pallas TPU copy kernel."""
    orig_shape = x.shape
    n = int(np.prod(orig_shape)) if len(orig_shape) else 1

    # Lane-dense 2-D view: (rows, 128), rows padded to a sublane multiple.
    rows = pl.cdiv(n, LANE)
    rows_p = _round_up(max(rows, SUB), SUB)
    if rows_p <= TM_MAX:
        tm = rows_p                       # single block -> grid of 1 step
    else:
        tm = TM_MAX
        rows_p = _round_up(rows_p, tm)

    flat = x.reshape(-1)
    padded = rows_p * LANE
    if padded != n:
        flat = jnp.pad(flat, (0, padded - n))
    x2d = flat.reshape(rows_p, LANE)

    out2d = pl.pallas_call(
        _copy_kernel,
        out_shape=jax.ShapeDtypeStruct((rows_p, LANE), x.dtype),
        grid=(rows_p // tm,),
        in_specs=[pl.BlockSpec((tm, LANE), lambda i: (i, 0))],
        out_specs=pl.BlockSpec((tm, LANE), lambda i: (i, 0)),
        compiler_params=pltpu.CompilerParams(
            dimension_semantics=("parallel",)),
    )(x2d)

    return out2d.reshape(-1)[:n].reshape(orig_shape)


if __name__ == "__main__":
    key = jax.random.PRNGKey(0)
    x = jax.random.normal(key, (2, 4, 16, 16), jnp.float32)

    fwd = jax.jit(identity_forward)
    out = jax.block_until_ready(fwd(x))

    assert out.shape == x.shape and out.dtype == x.dtype, (out.shape, out.dtype)
    np.testing.assert_array_equal(np.asarray(out), np.asarray(x))

    print("KERNEL_OK")
</pallas_src>

<mosaic_0001>
module attributes {stable_mosaic.version = 11 : i64} {
  func.func @_copy_kernel(%arg0: i32, %arg1: memref<16x128xf32, #tpu.memory_space<vmem>>, %arg2: memref<16x128xf32, #tpu.memory_space<vmem>>) attributes {dimension_semantics = [#tpu.dimension_semantics<parallel>], iteration_bounds = array<i64: 1>, scalar_prefetch = 0 : i64, scratch_operands = 0 : i64, tpu.core_type = #tpu.core_type<tc>, window_params = [{transform_indices = @transform_0, window_bounds = array<i64: 16, 128>}, {transform_indices = @transform_1, window_bounds = array<i64: 16, 128>}]} {
    %c0 = arith.constant 0 : index
    %c0_0 = arith.constant 0 : index
    %0 = vector.load %arg1[%c0, %c0_0] : memref<16x128xf32, #tpu.memory_space<vmem>>, vector<16x128xf32>
    %c0_1 = arith.constant 0 : index
    %c0_2 = arith.constant 0 : index
    %1 = vector.load %arg2[%c0_1, %c0_2] : memref<16x128xf32, #tpu.memory_space<vmem>>, vector<16x128xf32>
    tpu.vector_store %arg2[%c0_1, %c0_2], %0 {strides = array<i32>} : memref<16x128xf32, #tpu.memory_space<vmem>>, vector<16x128xf32>,
    return
  }
  func.func @transform_0(%arg0: i32) -> (i32, i32) {
    %c0_i32 = arith.constant 0 : i32
    %c0_i32_0 = arith.constant 0 : i32
    return %arg0, %c0_i32 : i32, i32
  }
  func.func @transform_1(%arg0: i32) -> (i32, i32) {
    %c0_i32 = arith.constant 0 : i32
    %c0_i32_0 = arith.constant 0 : i32
    return %arg0, %c0_i32 : i32, i32
  }
}

</mosaic_0001>

<llo_original>
// kernel: identity_forward.1
$region0: #{identity_forward.1}
  #allocation0 [shape = 'u32[]', space=smem, size = 0x4, offset = 0x4, fixed_abs, tag = 'smem constant byte address 0x4 - core index']
  #allocation1 [shape = 'u32[144,128]{1,0:T(1,128)}', space=vmem, size = 0x12000, scoped, tag = 'internal scratch']
  %s0 = inlined_call_operand.vmem [shape: f32[16,128], index: 0, kind: input, shape index: {}]
  %s1 = inlined_call_operand.vmem [shape: f32[16,128], index: 1, kind: output, shape index: {}]
  %s2 = sld [smem:[#allocation0]]
  $region14: #{identity_forward.1} parent=0
    _
  %s4 = ssub.s32 1, %s2
  %s5 = scalar_select 0, %s4, %s2
  // Predicated region
  $region2: #{identity_forward.1} parent=0 // pred_check
    _
  $region3: #{identity_forward.1} parent=0 // pred_check_branch
    %7 = sbr.rel (0) target = $region5
  $region4: #{identity_forward.1} parent=0 // pred_region
    _
  $region5: #{identity_forward.1} parent=0 // pred_fallthru
    _
  %v8 = vld [vmem:[%s0] sm:$0xff]
  %v9 = vld [vmem:[%s0 + $0x8] sm:$0xff]
  %10 = vst [vmem:[%s1] sm:$0xff] %v8
  %11 = vst [vmem:[%s1 + $0x8] sm:$0xff] %v9
  // Predicated region
  $region6: #{identity_forward.1} parent=0 // pred_check
    _
  $region7: #{identity_forward.1} parent=0 // pred_check_branch
    %13 = sbr.rel (0) target = $region9
  $region8: #{identity_forward.1} parent=0 // pred_region
    _
  $region9: #{identity_forward.1} parent=0 // pred_fallthru
    _
  // Predicated region
  $region10: #{identity_forward.1} parent=0 // pred_check
    _
  $region11: #{identity_forward.1} parent=0 // pred_check_branch
    %15 = sbr.rel (0) target = $region13
  $region12: #{identity_forward.1} parent=0 // pred_region
    _
  $region13: #{identity_forward.1} parent=0 // pred_fallthru
    _

</llo_original>
